<compile_context>
chip_gen: v6e
topology: v6e:2x2x1
jax: 0.10.0
libtpu: 0.0.40
codegen_flags: <defaults>
</compile_context>

<pallas_src>
import jax
import jax.numpy as jnp
from jax import lax
from jax.experimental import pallas as pl
from jax.experimental.pallas import tpu as pltpu


def gat_gate_kernel(x_ref, adj_ref, wt_ref, wb_ref, a_ref, gw_ref, gb_ref, out_ref):
    # Block views:
    #   x_ref  : (Bt*N, F)   adj_ref: (Bt, N, N)   out_ref: (Bt*N, F)
    #   wt_ref : (F, F)      wb_ref : (1, F)       a_ref  : (F, F)
    #   gw_ref : (2, F)  [row 0: gate weight on x, row 1: gate weight on h']
    #   gb_ref : (1, 1)
    bt, n, _ = adj_ref.shape

    # ---- shared-weight matmuls on the folded (Bt*N, F) slab (big MXU M) ------
    x2 = x_ref[...]                                                    # (Bt*N, F)
    h2 = jnp.dot(x2, wt_ref[...], preferred_element_type=jnp.float32) + wb_ref[...]
    hA2 = jnp.dot(h2, a_ref[...], preferred_element_type=jnp.float32)

    gw = gw_ref[...]                                                   # (2, F)
    gwx = gw[0:1, :]                                                   # (1, F)
    gwh = gw[1:2, :]                                                   # (1, F)
    gb = gb_ref[...]                                                   # (1, 1)

    # Contract last dims (X @ Y^T) directly on the MXU -- no explicit .T.
    dn_t = (((1,), (1,)), ((), ()))

    # ---- per-graph attention: static unrolled loop over the Bt block --------
    for b in range(bt):
        lo = b * n
        hi = lo + n
        x_b = x2[lo:hi, :]                                             # (N, F)
        h_b = h2[lo:hi, :]
        hA_b = hA2[lo:hi, :]
        adj_b = adj_ref[b]                                             # (N, N)

        # e + e^T = hA.h^T + h.hA^T  (two trans_b matmuls, zero XLU transposes)
        e = (lax.dot_general(hA_b, h_b, dn_t, preferred_element_type=jnp.float32)
             + lax.dot_general(h_b, hA_b, dn_t, preferred_element_type=jnp.float32))

        # mask with a scalar immediate; softmax over dim=1 (axis 0 per graph)
        att = jnp.where(adj_b > 0.0, e, -9e15)
        m = jnp.max(att, axis=0, keepdims=True)                        # (1, N)
        p = jnp.exp(att - m)
        s = jnp.sum(p, axis=0, keepdims=True)                          # (1, N)
        attention = (p * pl.reciprocal(s, approx=True)) * adj_b        # EUP vrcp

        # h' = relu(attention @ h)
        h_prime = jnp.maximum(
            jnp.dot(attention, h_b, preferred_element_type=jnp.float32), 0.0)

        # coeff = sigmoid(gate(cat([x, h'], -1))); residual mix; single fused store
        logit = (jnp.sum(x_b * gwx, axis=-1, keepdims=True)
                 + jnp.sum(h_prime * gwh, axis=-1, keepdims=True)
                 + gb)                                                 # (N, 1)
        coeff = jax.nn.sigmoid(logit)
        out_ref[lo:hi, :] = coeff * x_b + (1.0 - coeff) * h_prime


def _pick_block_batch(B, N, F):
    """Graphs per grid step (Bt)."""
    if B <= 1:
        return 1
    if N % 8:                         # flattened (Bt*N, F) block needs sublane % 8
        return B                      # full-extent block is always layout-legal
    # Target ~256 folded rows for the MXU, keep >= 2 grid steps (v7x has 2 TCs),
    # bound the unroll, and keep double-buffered x/adj/out blocks << VMEM
    # (64 MiB on v7x; 32 MiB scoped default elsewhere).
    bt = min(B // 2, max(1, min(16, pl.cdiv(256, N))))
    vmem_cap = (8 << 20) // (8 * (N * N + 2 * N * F))   # 2 buffers x 4 B/elem
    bt = max(1, min(bt, max(1, vmem_cap)))
    while B % bt:                     # block must tile the batch exactly
        bt -= 1
    return bt


def gat_gate(x, adj, params, *, block_batch=None):
    """x: (B, N, F) f32, adj: (B, N, N) f32 -> (B, N, F) f32 (GAT_gate forward)."""
    B, N, F = x.shape
    wt, wb, A, gw, gb = params
    bt = _pick_block_batch(B, N, F) if block_batch is None else block_batch
    assert B % bt == 0

    x_flat = x.reshape(B * N, F)      # contiguous reshape: free at the XLA level
    grid = (B // bt,)

    full = lambda shape: pl.BlockSpec(shape, lambda i: (0,) * len(shape))

    out_flat = pl.pallas_call(
        gat_gate_kernel,
        out_shape=jax.ShapeDtypeStruct((B * N, F), jnp.float32),
        grid_spec=pltpu.PrefetchScalarGridSpec(
            num_scalar_prefetch=0,
            grid=grid,
            in_specs=[
                pl.BlockSpec((bt * N, F), lambda i: (i, 0)),    # x   (Bt graphs)
                pl.BlockSpec((bt, N, N), lambda i: (i, 0, 0)),  # adj (Bt graphs)
                full((F, F)),     # W^T
                full((1, F)),     # W bias
                full((F, F)),     # A
                full((2, F)),     # gate weights [x-half ; h'-half]
                full((1, 1)),     # gate bias (tiny; could also live in SMEM)
            ],
            out_specs=pl.BlockSpec((bt * N, F), lambda i: (i, 0)),
        ),
        compiler_params=pltpu.CompilerParams(
            dimension_semantics=("parallel",)),
    )(x_flat, adj, wt, wb, A, gw, gb)
    return out_flat.reshape(B, N, F)


def gat_gate_reference(x, adj, params):
    """Pure-JAX reference mirroring the PyTorch forward exactly."""
    wt, wb, A, gw, gb = params
    gwx, gwh = gw[0:1], gw[1:2]                              # (1, F) each
    h = x @ wt + wb                                          # (B, N, F)
    e = jnp.einsum('ijl,ikl->ijk', h @ A, h)                 # (B, N, N)
    e = e + jnp.transpose(e, (0, 2, 1))
    att = jnp.where(adj > 0, e, -9e15 * jnp.ones_like(e))
    att = jax.nn.softmax(att, axis=1)
    att = att * adj
    h_prime = jax.nn.relu(jnp.einsum('aij,ajk->aik', att, h))
    gate_logit = (jnp.sum(x * gwx[None], axis=-1, keepdims=True)
                  + jnp.sum(h_prime * gwh[None], axis=-1, keepdims=True)
                  + gb[None])
    coeff = jax.nn.sigmoid(gate_logit)
    return coeff * x + (1.0 - coeff) * h_prime


if __name__ == "__main__":
    def make_case(key, B, N, F):
        kx, kadj, kw, kwb, ka, kg, kgb = jax.random.split(key, 7)
        x = jax.random.normal(kx, (B, N, F), dtype=jnp.float32)
        # symmetric 0/1 adjacency with self loops (typical for this model)
        a_raw = jax.random.uniform(kadj, (B, N, N)) > 0.6
        adj = (a_raw | jnp.transpose(a_raw, (0, 2, 1))).astype(jnp.float32)
        adj = jnp.maximum(adj, jnp.eye(N, dtype=jnp.float32)[None])
        # synthetic params (module init has A = zeros -> trivial attention; use
        # small randoms so the test is meaningful). n_in == n_out (residual mix).
        wt = 0.1 * jax.random.normal(kw, (F, F), dtype=jnp.float32)    # W^T
        wb = 0.1 * jax.random.normal(kwb, (1, F), dtype=jnp.float32)   # W bias
        A = 0.1 * jax.random.normal(ka, (F, F), dtype=jnp.float32)     # attention A
        gate_w = 0.1 * jax.random.normal(kg, (1, 2 * F), dtype=jnp.float32)
        gw = gate_w.reshape(2, F)                  # row 0 acts on x, row 1 on h'
        gb = 0.1 * jax.random.normal(kgb, (1, 1), dtype=jnp.float32)   # gate bias
        return x, adj, (wt, wb, A, gw, gb)

    k1, k2 = jax.random.split(jax.random.PRNGKey(0))
    # case 1: canonical small shape (Bt=1, grid=(2,));  case 2: exercises the
    # batched block path (B=8 -> Bt=4, grid=(2,), folded M = 64 rows).
    for kk, B, N, F in ((k1, 2, 16, 32), (k2, 8, 16, 32)):
        x, adj, params = make_case(kk, B, N, F)
        out = jax.block_until_ready(gat_gate(x, adj, params))
        ref = gat_gate_reference(x, adj, params)
        assert out.shape == (B, N, F)
        # approx=True softmax reciprocal -> slightly relaxed tolerance
        assert jnp.allclose(out, ref, atol=2e-3, rtol=2e-3), \
            f"mismatch vs reference (B={B})"

    print("KERNEL_OK")
</pallas_src>

<mosaic_0001>
module attributes {stable_mosaic.version = 11 : i64} {
  func.func @gat_gate_kernel(%arg0: i32, %arg1: memref<16x32xf32, #tpu.memory_space<vmem>>, %arg2: memref<1x16x16xf32, #tpu.memory_space<vmem>>, %arg3: memref<32x32xf32, #tpu.memory_space<vmem>>, %arg4: memref<1x32xf32, #tpu.memory_space<vmem>>, %arg5: memref<32x32xf32, #tpu.memory_space<vmem>>, %arg6: memref<2x32xf32, #tpu.memory_space<vmem>>, %arg7: memref<1x1xf32, #tpu.memory_space<vmem>>, %arg8: memref<16x32xf32, #tpu.memory_space<vmem>>) attributes {dimension_semantics = [#tpu.dimension_semantics<parallel>], iteration_bounds = array<i64: 2>, scalar_prefetch = 0 : i64, scratch_operands = 0 : i64, tpu.core_type = #tpu.core_type<tc>, window_params = [{transform_indices = @transform_0, window_bounds = array<i64: 16, 32>}, {transform_indices = @transform_1, window_bounds = array<i64: 1, 16, 16>}, {pipeline_mode = #tpu.pipeline_mode<synchronous>, transform_indices = @transform_2, window_bounds = array<i64: 32, 32>}, {pipeline_mode = #tpu.pipeline_mode<synchronous>, transform_indices = @transform_3, window_bounds = array<i64: 1, 32>}, {pipeline_mode = #tpu.pipeline_mode<synchronous>, transform_indices = @transform_4, window_bounds = array<i64: 32, 32>}, {pipeline_mode = #tpu.pipeline_mode<synchronous>, transform_indices = @transform_5, window_bounds = array<i64: 2, 32>}, {pipeline_mode = #tpu.pipeline_mode<synchronous>, transform_indices = @transform_6, window_bounds = array<i64: 1, 1>}, {transform_indices = @transform_7, window_bounds = array<i64: 16, 32>}]} {
    %c0 = arith.constant 0 : index
    %c0_0 = arith.constant 0 : index
    %0 = vector.load %arg1[%c0, %c0_0] : memref<16x32xf32, #tpu.memory_space<vmem>>, vector<16x32xf32>
    %c0_1 = arith.constant 0 : index
    %c0_2 = arith.constant 0 : index
    %1 = vector.load %arg3[%c0_1, %c0_2] : memref<32x32xf32, #tpu.memory_space<vmem>>, vector<32x32xf32>
    %cst = arith.constant dense<0.000000e+00> : vector<16x32xf32>
    %2 = tpu.matmul %0, %1, %cst {dimension_numbers = #tpu.dot_dimension_numbers<[1], [0], [0], [1], [0, 0, 1, 1], [], []>} : vector<16x32xf32>, vector<32x32xf32>, vector<16x32xf32> -> vector<16x32xf32>
    %c0_3 = arith.constant 0 : index
    %c0_4 = arith.constant 0 : index
    %3 = vector.load %arg4[%c0_3, %c0_4] : memref<1x32xf32, #tpu.memory_space<vmem>>, vector<1x32xf32>
    %4 = vector.broadcast %3 : vector<1x32xf32> to vector<16x32xf32>
    %5 = arith.addf %2, %4 : vector<16x32xf32>
    %c0_5 = arith.constant 0 : index
    %c0_6 = arith.constant 0 : index
    %6 = vector.load %arg5[%c0_5, %c0_6] : memref<32x32xf32, #tpu.memory_space<vmem>>, vector<32x32xf32>
    %cst_7 = arith.constant dense<0.000000e+00> : vector<16x32xf32>
    %7 = tpu.matmul %5, %6, %cst_7 {dimension_numbers = #tpu.dot_dimension_numbers<[1], [0], [0], [1], [0, 0, 1, 1], [], []>} : vector<16x32xf32>, vector<32x32xf32>, vector<16x32xf32> -> vector<16x32xf32>
    %c0_8 = arith.constant 0 : index
    %c0_9 = arith.constant 0 : index
    %8 = vector.load %arg6[%c0_8, %c0_9] : memref<2x32xf32, #tpu.memory_space<vmem>>, vector<2x32xf32>
    %9 = vector.extract_strided_slice %8 {offsets = [0, 0], sizes = [1, 32], strides = [1, 1]} : vector<2x32xf32> to vector<1x32xf32>
    %10 = vector.extract_strided_slice %8 {offsets = [1, 0], sizes = [1, 32], strides = [1, 1]} : vector<2x32xf32> to vector<1x32xf32>
    %c0_10 = arith.constant 0 : index
    %c0_11 = arith.constant 0 : index
    %11 = vector.load %arg7[%c0_10, %c0_11] : memref<1x1xf32, #tpu.memory_space<vmem>>, vector<1x1xf32>
    %c0_12 = arith.constant 0 : index
    %c0_13 = arith.constant 0 : index
    %c0_14 = arith.constant 0 : index
    %12 = vector.load %arg2[%c0_12, %c0_13, %c0_14] : memref<1x16x16xf32, #tpu.memory_space<vmem>>, vector<1x16x16xf32>
    %13 = vector.shape_cast %12 : vector<1x16x16xf32> to vector<16x16xf32>
    %cst_15 = arith.constant dense<0.000000e+00> : vector<16x16xf32>
    %14 = tpu.matmul %7, %5, %cst_15 {dimension_numbers = #tpu.dot_dimension_numbers<[1], [1], [0], [0], [0, 0, 1, 0], [], []>} : vector<16x32xf32>, vector<16x32xf32>, vector<16x16xf32> -> vector<16x16xf32>
    %cst_16 = arith.constant dense<0.000000e+00> : vector<16x16xf32>
    %15 = tpu.matmul %5, %7, %cst_16 {dimension_numbers = #tpu.dot_dimension_numbers<[1], [1], [0], [0], [0, 0, 1, 0], [], []>} : vector<16x32xf32>, vector<16x32xf32>, vector<16x16xf32> -> vector<16x16xf32>
    %16 = arith.addf %14, %15 : vector<16x16xf32>
    %cst_17 = arith.constant 0.000000e+00 : f32
    %17 = vector.broadcast %cst_17 : f32 to vector<16x16xf32>
    %18 = arith.cmpf ogt, %13, %17 : vector<16x16xf32>
    %cst_18 = arith.constant -9.000000e+15 : f32
    %19 = vector.broadcast %cst_18 : f32 to vector<16x16xf32>
    %20 = arith.select %18, %16, %19 : vector<16x16xi1>, vector<16x16xf32>
    %cst_19 = arith.constant dense<0xFF800000> : vector<16xf32>
    %21 = vector.multi_reduction <maximumf>, %20, %cst_19 [0] : vector<16x16xf32> to vector<16xf32>
    %22 = vector.shape_cast %21 : vector<16xf32> to vector<1x16xf32>
    %23 = vector.broadcast %22 : vector<1x16xf32> to vector<16x16xf32>
    %24 = arith.subf %20, %23 : vector<16x16xf32>
    %25 = math.exp %24 : vector<16x16xf32>
    %cst_20 = arith.constant dense<0.000000e+00> : vector<16xf32>
    %26 = vector.multi_reduction <add>, %25, %cst_20 [0] : vector<16x16xf32> to vector<16xf32>
    %27 = vector.shape_cast %26 : vector<16xf32> to vector<1x16xf32>
    %28 = tpu.reciprocal %27 {approx = true} : vector<1x16xf32> -> vector<1x16xf32>
    %29 = vector.broadcast %28 : vector<1x16xf32> to vector<16x16xf32>
    %30 = arith.mulf %25, %29 : vector<16x16xf32>
    %31 = arith.mulf %30, %13 : vector<16x16xf32>
    %cst_21 = arith.constant dense<0.000000e+00> : vector<16x32xf32>
    %32 = tpu.matmul %31, %5, %cst_21 {dimension_numbers = #tpu.dot_dimension_numbers<[1], [0], [0], [1], [0, 0, 1, 1], [], []>} : vector<16x16xf32>, vector<16x32xf32>, vector<16x32xf32> -> vector<16x32xf32>
    %cst_22 = arith.constant 0.000000e+00 : f32
    %33 = vector.broadcast %cst_22 : f32 to vector<16x32xf32>
    %34 = arith.maximumf %32, %33 : vector<16x32xf32>
    %35 = vector.broadcast %9 : vector<1x32xf32> to vector<16x32xf32>
    %36 = arith.mulf %0, %35 : vector<16x32xf32>
    %cst_23 = arith.constant dense<0.000000e+00> : vector<16xf32>
    %37 = vector.multi_reduction <add>, %36, %cst_23 [1] : vector<16x32xf32> to vector<16xf32>
    %38 = vector.shape_cast %37 : vector<16xf32> to vector<16x1xf32>
    %39 = vector.broadcast %10 : vector<1x32xf32> to vector<16x32xf32>
    %40 = arith.mulf %34, %39 : vector<16x32xf32>
    %cst_24 = arith.constant dense<0.000000e+00> : vector<16xf32>
    %41 = vector.multi_reduction <add>, %40, %cst_24 [1] : vector<16x32xf32> to vector<16xf32>
    %42 = vector.shape_cast %41 : vector<16xf32> to vector<16x1xf32>
    %43 = arith.addf %38, %42 : vector<16x1xf32>
    %44 = vector.broadcast %11 : vector<1x1xf32> to vector<16x1xf32>
    %45 = arith.addf %43, %44 : vector<16x1xf32>
    %46 = arith.negf %45 : vector<16x1xf32>
    %47 = math.exp %46 : vector<16x1xf32>
    %cst_25 = arith.constant 1.000000e+00 : f32
    %48 = vector.broadcast %cst_25 : f32 to vector<16x1xf32>
    %49 = arith.addf %48, %47 : vector<16x1xf32>
    %50 = arith.divf %48, %49 : vector<16x1xf32>
    %51 = vector.broadcast %50 : vector<16x1xf32> to vector<16x32xf32>
    %52 = arith.mulf %51, %0 : vector<16x32xf32>
    %cst_26 = arith.constant 1.000000e+00 : f32
    %53 = vector.broadcast %cst_26 : f32 to vector<16x1xf32>
    %54 = arith.subf %53, %50 : vector<16x1xf32>
    %55 = vector.broadcast %54 : vector<16x1xf32> to vector<16x32xf32>
    %56 = arith.mulf %55, %34 : vector<16x32xf32>
    %57 = arith.addf %52, %56 : vector<16x32xf32>
    %c0_27 = arith.constant 0 : index
    %c0_28 = arith.constant 0 : index
    %58 = vector.load %arg8[%c0_27, %c0_28] : memref<16x32xf32, #tpu.memory_space<vmem>>, vector<16x32xf32>
    tpu.vector_store %arg8[%c0_27, %c0_28], %57 {strides = array<i32>} : memref<16x32xf32, #tpu.memory_space<vmem>>, vector<16x32xf32>,
    return
  }
  func.func @transform_0(%arg0: i32) -> (i32, i32) {
    %c0_i32 = arith.constant 0 : i32
    %c0_i32_0 = arith.constant 0 : i32
    return %arg0, %c0_i32 : i32, i32
  }
  func.func @transform_1(%arg0: i32) -> (i32, i32, i32) {
    %c0_i32 = arith.constant 0 : i32
    %c0_i32_0 = arith.constant 0 : i32
    %c0_i32_1 = arith.constant 0 : i32
    return %arg0, %c0_i32, %c0_i32_0 : i32, i32, i32
  }
  func.func @transform_2(%arg0: i32) -> (i32, i32) {
    %c0_i32 = arith.constant 0 : i32
    %c0_i32_0 = arith.constant 0 : i32
    %c0_i32_1 = arith.constant 0 : i32
    return %c0_i32, %c0_i32_0 : i32, i32
  }
  func.func @transform_3(%arg0: i32) -> (i32, i32) {
    %c0_i32 = arith.constant 0 : i32
    %c0_i32_0 = arith.constant 0 : i32
    %c0_i32_1 = arith.constant 0 : i32
    return %c0_i32, %c0_i32_0 : i32, i32
  }
  func.func @transform_4(%arg0: i32) -> (i32, i32) {
    %c0_i32 = arith.constant 0 : i32
    %c0_i32_0 = arith.constant 0 : i32
    %c0_i32_1 = arith.constant 0 : i32
    return %c0_i32, %c0_i32_0 : i32, i32
  }
  func.func @transform_5(%arg0: i32) -> (i32, i32) {
    %c0_i32 = arith.constant 0 : i32
    %c0_i32_0 = arith.constant 0 : i32
    %c0_i32_1 = arith.constant 0 : i32
    return %c0_i32, %c0_i32_0 : i32, i32
  }
  func.func @transform_6(%arg0: i32) -> (i32, i32) {
    %c0_i32 = arith.constant 0 : i32
    %c0_i32_0 = arith.constant 0 : i32
    %c0_i32_1 = arith.constant 0 : i32
    return %c0_i32, %c0_i32_0 : i32, i32
  }
  func.func @transform_7(%arg0: i32) -> (i32, i32) {
    %c0_i32 = arith.constant 0 : i32
    %c0_i32_0 = arith.constant 0 : i32
    return %arg0, %c0_i32 : i32, i32
  }
}

</mosaic_0001>

<llo_original>
// kernel: tpu_custom_call.1
$region0: #{tpu_custom_call.1}
  #allocation0 [shape = 'u32[]', space=smem, size = 0x4, offset = 0x4, fixed_abs, tag = 'smem constant byte address 0x4 - core index']
  #allocation1 [shape = 'u32[144,128]{1,0:T(1,128)}', space=vmem, size = 0x12000, scoped, tag = 'internal scratch']
  #allocation2 [shape = 'f32[1,1]{1,0:T(1,128)S(1)}', space=vmem, size = 0x200, scoped, tag = 'scoped memory for tpu_custom_call.1']
  %s0 = inlined_call_operand.hbm [shape: f32[32,32], index: 0, kind: input, shape index: {}]
  %s1 = inlined_call_operand.hbm [shape: f32[2,16,16], index: 1, kind: input, shape index: {}]
  %s2 = inlined_call_operand.hbm [shape: f32[32,32], index: 2, kind: input, shape index: {}]
  %s3 = inlined_call_operand.vmem [shape: f32[1,32], index: 3, kind: input, shape index: {}]
  %s4 = inlined_call_operand.hbm [shape: f32[32,32], index: 4, kind: input, shape index: {}]
  %s5 = inlined_call_operand.vmem [shape: f32[2,32], index: 5, kind: input, shape index: {}]
  %s6 = inlined_call_operand.<no memory space> [shape: f32[1,1], index: 6, kind: input, shape index: {}]
  %s7 = inlined_call_operand.hbm [shape: f32[32,32], index: 7, kind: output, shape index: {}]
  %s8 = sld [smem:[#allocation0]]
  $region77: #{tpu_custom_call.1} parent=0
    _
  %s10 = ssub.s32 1, %s8
  %s11 = scalar_select 0, %s10, %s8
  %v12 = vstv %s6
  %13 = vst [vmem:[#allocation2] sm:$0x1] %v12
  $region1: #{tpu_custom_call.1} parent=0
    #allocation3 [shape = 'u8[16384]{0}', space=vmem, size = 0x4000, scoped, tag = 'input window, operand 0']
    #allocation4 [shape = 's32[2]{0}', space=sflag, size = 0x8, scoped, tag = 'scoped memory for tpu_custom_call.1']
    #allocation5 [shape = 's32[2]{0}', space=sflag, size = 0x8, scoped, tag = 'scoped memory for tpu_custom_call.1']
    #allocation6 [shape = 'u8[16384]{0}', space=vmem, size = 0x4000, scoped, tag = 'input window, operand 1']
    #allocation7 [shape = 's32[2]{0}', space=sflag, size = 0x8, scoped, tag = 'scoped memory for tpu_custom_call.1']
    #allocation8 [shape = 'u8[16384]{0}', space=vmem, size = 0x4000, scoped, tag = 'input window, operand 2, single buffered']
    #allocation9 [shape = 'u8[16384]{0}', space=vmem, size = 0x4000, scoped, tag = 'input window, operand 4, single buffered']
    #allocation10 [shape = 's32[1]{0}', space=sflag, size = 0x4, scoped, tag = 'scoped memory for tpu_custom_call.1']
    #allocation11 [shape = 'u8[16384]{0}', space=vmem, size = 0x4000, scoped, tag = 'output window, operand 0']
    %14 = vsyncpa [#allocation4], 0
    %s15 = scalar_lea.sflag [#allocation4], 1
    %16 = vsyncpa %s15, 0
    %17 = vsyncpa [#allocation7], 0
    %s18 = scalar_lea.sflag [#allocation7], 1
    %19 = vsyncpa %s18, 0
    %20 = vsyncpa [#allocation10], 0
    %21 = vsyncpa [#allocation5], 0
    %s22 = scalar_lea.sflag [#allocation5], 1
    %23 = vsyncpa %s22, 0
    loop: start=0, step=1, limit=4
    $region2: #{tpu_custom_call.1} parent=1 // loop_pre_header
      _
    $region3: #{tpu_custom_call.1} parent=1 // loop_header
      %s25 = sphi 0, %s29
      %p26 = scmp.ge.s32.totalorder %s25, 4
      %s35 = sphi 0, %s37
      %s38 = sphi 0, %s35
      %s39 = sphi 0, %s38
      %s55 = sphi 0, %s39
      %s61 = sphi 0, %s63
      %s64 = sphi 0, %s61
      %s65 = sphi 0, %s64
      %s81 = sphi 0, %s65
      %s85 = sphi 0, %s85
      %s87 = sphi 0, %s85
      %s88 = sphi 0, %s87
      %s102 = sphi 0, %s88
      %s106 = sphi 0, %s106
      %s108 = sphi 0, %s106
      %s109 = sphi 0, %s108
      %s123 = sphi 0, %s109
      %s127 = sphi 0, %s127
      %s129 = sphi 0, %s127
      %s130 = sphi 0, %s129
      %s144 = sphi 0, %s130
      %s148 = sphi 0, %s148
      %s150 = sphi 0, %s148
      %s151 = sphi 0, %s150
      %s165 = sphi 0, %s151
      %s169 = sphi 0, %s169
      %s171 = sphi 0, %s169
      %s172 = sphi 0, %s171
      %s186 = sphi 0, %s172
      %s192 = sphi 0, %s194
      %s195 = sphi 0, %s192
      %s196 = sphi 0, %s195
      %s212 = sphi 0, %s196
    $region4: #{tpu_custom_call.1} parent=1 // loop_header_branch
      %28 = sbr.rel (%p26) target = $region8
    $region5: #{tpu_custom_call.1} parent=1 // loop_body
      %s30 = ssub.s32 %s25, 1
      %s31 = ssub.s32 %s25, 2
      %s32 = sadd.s32 %s25, 1
      %s33 = ssub.s32 %s25, %s32
      %p34 = scmp.eq.s32.totalorder %s33, 0
      %s36 = sadd.s32 %s35, 1
      %s37 = scalar_select %p34, %s35, %s36
      %p40 = pneg %p34
      %p41 = scmp.eq.s32.totalorder %s25, 1
      %p42 = por %p40, %p41
      %p43 = scmp.ne.s32.totalorder %s35, %s38
      %p44 = scmp.eq.s32.totalorder %s25, 0
      %p45 = por %p43, %p44
      %p46 = scmp.ne.s32.totalorder %s35, %s38
      %p47 = scmp.eq.s32.totalorder %s30, 1
      %p48 = por %p46, %p47
      %p49 = scmp.ne.s32.totalorder %s38, %s39
      %p50 = scmp.eq.s32.totalorder %s30, 0
      %p51 = por %p49, %p50
      %p52 = scmp.ne.s32.totalorder %s38, %s39
      %p53 = scmp.eq.s32.totalorder %s31, 1
      %p54 = por %p52, %p53
      %p56 = scmp.ne.s32.totalorder %s39, %s55
      %p57 = scmp.eq.s32.totalorder %s31, 0
      %p58 = por %p56, %p57
      %s59 = ssub.s32 %s25, %s32
      %p60 = scmp.eq.s32.totalorder %s59, 0
      %s62 = sadd.s32 %s61, 1
      %s63 = scalar_select %p60, %s61, %s62
      %p66 = pneg %p60
      %p67 = scmp.eq.s32.totalorder %s25, 1
      %p68 = por %p66, %p67
      %p69 = scmp.ne.s32.totalorder %s61, %s64
      %p70 = scmp.eq.s32.totalorder %s25, 0
      %p71 = por %p69, %p70
      %p72 = scmp.ne.s32.totalorder %s61, %s64
      %p73 = scmp.eq.s32.totalorder %s30, 1
      %p74 = por %p72, %p73
      %p75 = scmp.ne.s32.totalorder %s64, %s65
      %p76 = scmp.eq.s32.totalorder %s30, 0
      %p77 = por %p75, %p76
      %p78 = scmp.ne.s32.totalorder %s64, %s65
      %p79 = scmp.eq.s32.totalorder %s31, 1
      %p80 = por %p78, %p79
      %p82 = scmp.ne.s32.totalorder %s65, %s81
      %p83 = scmp.eq.s32.totalorder %s31, 0
      %p84 = por %p82, %p83
      %s86 = sadd.s32 %s85, 1
      %p89 = scmp.eq.s32.totalorder %s25, 1
      %p90 = scmp.ne.s32.totalorder %s85, %s87
      %p91 = scmp.eq.s32.totalorder %s25, 0
      %p92 = por %p90, %p91
      %p93 = scmp.ne.s32.totalorder %s85, %s87
      %p94 = scmp.eq.s32.totalorder %s30, 1
      %p95 = por %p93, %p94
      %p96 = scmp.ne.s32.totalorder %s87, %s88
      %p97 = scmp.eq.s32.totalorder %s30, 0
      %p98 = por %p96, %p97
      %p99 = scmp.ne.s32.totalorder %s87, %s88
      %p100 = scmp.eq.s32.totalorder %s31, 1
      %p101 = por %p99, %p100
      %p103 = scmp.ne.s32.totalorder %s88, %s102
      %p104 = scmp.eq.s32.totalorder %s31, 0
      %p105 = por %p103, %p104
      %s107 = sadd.s32 %s106, 1
      %p110 = scmp.eq.s32.totalorder %s25, 1
      %p111 = scmp.ne.s32.totalorder %s106, %s108
      %p112 = scmp.eq.s32.totalorder %s25, 0
      %p113 = por %p111, %p112
      %p114 = scmp.ne.s32.totalorder %s106, %s108
      %p115 = scmp.eq.s32.totalorder %s30, 1
      %p116 = por %p114, %p115
      %p117 = scmp.ne.s32.totalorder %s108, %s109
      %p118 = scmp.eq.s32.totalorder %s30, 0
      %p119 = por %p117, %p118
      %p120 = scmp.ne.s32.totalorder %s108, %s109
      %p121 = scmp.eq.s32.totalorder %s31, 1
      %p122 = por %p120, %p121
      %p124 = scmp.ne.s32.totalorder %s109, %s123
      %p125 = scmp.eq.s32.totalorder %s31, 0
      %p126 = por %p124, %p125
      %s128 = sadd.s32 %s127, 1
      %p131 = scmp.eq.s32.totalorder %s25, 1
      %p132 = scmp.ne.s32.totalorder %s127, %s129
      %p133 = scmp.eq.s32.totalorder %s25, 0
      %p134 = por %p132, %p133
      %p135 = scmp.ne.s32.totalorder %s127, %s129
      %p136 = scmp.eq.s32.totalorder %s30, 1
      %p137 = por %p135, %p136
      %p138 = scmp.ne.s32.totalorder %s129, %s130
      %p139 = scmp.eq.s32.totalorder %s30, 0
      %p140 = por %p138, %p139
      %p141 = scmp.ne.s32.totalorder %s129, %s130
      %p142 = scmp.eq.s32.totalorder %s31, 1
      %p143 = por %p141, %p142
      %p145 = scmp.ne.s32.totalorder %s130, %s144
      %p146 = scmp.eq.s32.totalorder %s31, 0
      %p147 = por %p145, %p146
      %s149 = sadd.s32 %s148, 1
      %p152 = scmp.eq.s32.totalorder %s25, 1
      %p153 = scmp.ne.s32.totalorder %s148, %s150
      %p154 = scmp.eq.s32.totalorder %s25, 0
      %p155 = por %p153, %p154
      %p156 = scmp.ne.s32.totalorder %s148, %s150
      %p157 = scmp.eq.s32.totalorder %s30, 1
      %p158 = por %p156, %p157
      %p159 = scmp.ne.s32.totalorder %s150, %s151
      %p160 = scmp.eq.s32.totalorder %s30, 0
      %p161 = por %p159, %p160
      %p162 = scmp.ne.s32.totalorder %s150, %s151
      %p163 = scmp.eq.s32.totalorder %s31, 1
      %p164 = por %p162, %p163
      %p166 = scmp.ne.s32.totalorder %s151, %s165
      %p167 = scmp.eq.s32.totalorder %s31, 0
      %p168 = por %p166, %p167
      %s170 = sadd.s32 %s169, 1
      %p173 = scmp.eq.s32.totalorder %s25, 1
      %p174 = scmp.ne.s32.totalorder %s169, %s171
      %p175 = scmp.eq.s32.totalorder %s25, 0
      %p176 = por %p174, %p175
      %p177 = scmp.ne.s32.totalorder %s169, %s171
      %p178 = scmp.eq.s32.totalorder %s30, 1
      %p179 = por %p177, %p178
      %p180 = scmp.ne.s32.totalorder %s171, %s172
      %p181 = scmp.eq.s32.totalorder %s30, 0
      %p182 = por %p180, %p181
      %p183 = scmp.ne.s32.totalorder %s171, %s172
      %p184 = scmp.eq.s32.totalorder %s31, 1
      %p185 = por %p183, %p184
      %p187 = scmp.ne.s32.totalorder %s172, %s186
      %p188 = scmp.eq.s32.totalorder %s31, 0
      %p189 = por %p187, %p188
      %s190 = ssub.s32 %s25, %s32
      %p191 = scmp.eq.s32.totalorder %s190, 0
      %s193 = sadd.s32 %s192, 1
      %s194 = scalar_select %p191, %s192, %s193
      %p197 = pneg %p191
      %p198 = scmp.eq.s32.totalorder %s25, 1
      %p199 = por %p197, %p198
      %p200 = scmp.ne.s32.totalorder %s192, %s195
      %p201 = scmp.eq.s32.totalorder %s25, 0
      %p202 = por %p200, %p201
      %p203 = scmp.ne.s32.totalorder %s192, %s195
      %p204 = scmp.eq.s32.totalorder %s30, 1
      %p205 = por %p203, %p204
      %p206 = scmp.ne.s32.totalorder %s195, %s196
      %p207 = scmp.eq.s32.totalorder %s30, 0
      %p208 = por %p206, %p207
      %p209 = scmp.ne.s32.totalorder %s195, %s196
      %p210 = scmp.eq.s32.totalorder %s31, 1
      %p211 = por %p209, %p210
      %p213 = scmp.ne.s32.totalorder %s196, %s212
      %p214 = scmp.eq.s32.totalorder %s31, 0
      %p215 = por %p213, %p214
      %p216 = scmp.le.s32.totalorder 1, %s25
      %p217 = scmp.lt.s32.totalorder %s25, 3
      %p218 = pnand %p216, %p217
      %p219 = pneg %p218
      // Predicated region
      $region9: #{tpu_custom_call.1} parent=5 // pred_check
        _
      $region10: #{tpu_custom_call.1} parent=5 // pred_check_branch
        %221 = sbr.rel (%p218) target = $region12
      $region11: #{tpu_custom_call.1} parent=5 // pred_region
        %s222 = ssub.s32 %s25, 1
        // Predicated region
        $region13: #{tpu_custom_call.1} parent=11 // pred_check
          %p223 = pneg %p98
        $region14: #{tpu_custom_call.1} parent=11 // pred_check_branch
          %225 = sbr.rel (%p223) target = $region16
        $region15: #{tpu_custom_call.1} parent=11 // pred_region
          %s227 = ssub.s32 512, 512
          %228 = vsyncadd [#allocation7], %s227
          %s229 = sshll.u32 [#allocation8], 4
          %s230 = int_to_ptr.vmem [resolvable:$true] %s229
          %235 = dma.hbm_to_vmem [thread:$0]  %s2, 512, %s230, [#allocation7], 128, 128, 8
        $region16: #{tpu_custom_call.1} parent=11 // pred_fallthru
          _
        // Predicated region
        $region17: #{tpu_custom_call.1} parent=11 // pred_check
          %p236 = pneg %p119
        $region18: #{tpu_custom_call.1} parent=11 // pred_check_branch
          %238 = sbr.rel (%p236) target = $region20
        $region19: #{tpu_custom_call.1} parent=11 // pred_region
          _
        $region20: #{tpu_custom_call.1} parent=11 // pred_fallthru
          _
        // Predicated region
        $region21: #{tpu_custom_call.1} parent=11 // pred_check
          %p239 = pneg %p140
        $region22: #{tpu_custom_call.1} parent=11 // pred_check_branch
          %241 = sbr.rel (%p239) target = $region24
        $region23: #{tpu_custom_call.1} parent=11 // pred_region
          %s243 = ssub.s32 512, 512
          %244 = vsyncadd [#allocation10], %s243
          %s245 = sshll.u32 [#allocation9], 4
          %s246 = int_to_ptr.vmem [resolvable:$true] %s245
          %251 = dma.hbm_to_vmem [thread:$0]  %s4, 512, %s246, [#allocation10], 128, 128, 8
        $region24: #{tpu_custom_call.1} parent=11 // pred_fallthru
          _
        // Predicated region
        $region25: #{tpu_custom_call.1} parent=11 // pred_check
          %p252 = pneg %p161
        $region26: #{tpu_custom_call.1} parent=11 // pred_check_branch
          %254 = sbr.rel (%p252) target = $region28
        $region27: #{tpu_custom_call.1} parent=11 // pred_region
          _
        $region28: #{tpu_custom_call.1} parent=11 // pred_fallthru
          _
        // Predicated region
        $region29: #{tpu_custom_call.1} parent=11 // pred_check
          %p255 = pneg %p182
        $region30: #{tpu_custom_call.1} parent=11 // pred_check_branch
          %257 = sbr.rel (%p255) target = $region32
        $region31: #{tpu_custom_call.1} parent=11 // pred_region
          _
        $region32: #{tpu_custom_call.1} parent=11 // pred_fallthru
          _
      $region12: #{tpu_custom_call.1} parent=5 // pred_fallthru
        _
      %p258 = scmp.lt.s32.totalorder %s25, 2
      // Predicated region
      $region33: #{tpu_custom_call.1} parent=5 // pred_check
        %p259 = pneg %p258
      $region34: #{tpu_custom_call.1} parent=5 // pred_check_branch
        %261 = sbr.rel (%p259) target = $region36
      $region35: #{tpu_custom_call.1} parent=5 // pred_region
        // Predicated region
        $region37: #{tpu_custom_call.1} parent=35 // pred_check
          %p262 = pneg %p45
        $region38: #{tpu_custom_call.1} parent=35 // pred_check_branch
          %264 = sbr.rel (%p262) target = $region40
        $region39: #{tpu_custom_call.1} parent=35 // pred_region
          %s265 = sand.u32 %s35, 1
          %s266 = scalar_lea.sflag [#allocation4], %s265
          %s267 = sand.u32 %s35, 1
          %s268 = smul.addr %s267, 16
          %s269 = scalar_lea.vmem [#allocation3], %s268
          %s270 = smul.u32 2, %s25
          %s272 = ssub.s32 256, 256
          %273 = vsyncadd %s266, %s272
          %s274 = smul.addr %s270, 128
          %s275 = scalar_lea.hbm %s0, %s274
          %s276 = sshll.u32 %s269, 4
          %s277 = int_to_ptr.vmem [resolvable:$true] %s276
          %282 = dma.hbm_to_vmem [thread:$0]  %s275, 256, %s277, %s266, 128, 128, 8
        $region40: #{tpu_custom_call.1} parent=35 // pred_fallthru
          _
        // Predicated region
        $region41: #{tpu_custom_call.1} parent=35 // pred_check
          %p283 = pneg %p71
        $region42: #{tpu_custom_call.1} parent=35 // pred_check_branch
          %285 = sbr.rel (%p283) target = $region44
        $region43: #{tpu_custom_call.1} parent=35 // pred_region
          %s286 = sand.u32 %s25, 1
          %s287 = scalar_lea.sflag [#allocation7], %s286
          %s288 = sand.u32 %s61, 1
          %s289 = smul.addr %s288, 16
          %s290 = scalar_lea.vmem [#allocation6], %s289
          %s292 = ssub.s32 256, 256
          %293 = vsyncadd %s287, %s292
          %s294 = smul.addr %s25, 2
          %s295 = smul.addr %s294, 128
          %s296 = scalar_lea.hbm %s1, %s295
          %s297 = sshll.u32 %s290, 4
          %s298 = int_to_ptr.vmem [resolvable:$true] %s297
          %303 = dma.hbm_to_vmem [thread:$0]  %s296, 256, %s298, %s287, 128, 128, 8
        $region44: #{tpu_custom_call.1} parent=35 // pred_fallthru
          _
      $region36: #{tpu_custom_call.1} parent=5 // pred_fallthru
        _
      %p304 = scmp.le.s32.totalorder 1, %s25
      %p305 = scmp.lt.s32.totalorder %s25, 3
      %p306 = pnand %p304, %p305
      %p307 = pneg %p306
      // Predicated region
      $region45: #{tpu_custom_call.1} parent=5 // pred_check
        _
      $region46: #{tpu_custom_call.1} parent=5 // pred_check_branch
        %309 = sbr.rel (%p306) target = $region48
      $region47: #{tpu_custom_call.1} parent=5 // pred_region
        %s310 = ssub.s32 %s25, 1
        %s311 = sand.u32 %s38, 1
        %s312 = scalar_lea.sflag [#allocation4], %s311
        %s313 = sand.u32 %s38, 1
        %s314 = smul.addr %s313, 16
        %s315 = scalar_lea.vmem [#allocation3], %s314
        // Predicated region
        $region49: #{tpu_custom_call.1} parent=47 // pred_check
          %p316 = pneg %p51
        $region50: #{tpu_custom_call.1} parent=47 // pred_check_branch
          %318 = sbr.rel (%p316) target = $region52
        $region51: #{tpu_custom_call.1} parent=47 // pred_region
          %319 = dma.done %s312, 256
        $region52: #{tpu_custom_call.1} parent=47 // pred_fallthru
          _
        %s320 = sand.u32 %s30, 1
        %s321 = scalar_lea.sflag [#allocation7], %s320
        %s322 = sand.u32 %s64, 1
        %s323 = smul.addr %s322, 16
        %s324 = scalar_lea.vmem [#allocation6], %s323
        // Predicated region
        $region53: #{tpu_custom_call.1} parent=47 // pred_check
          %p325 = pneg %p77
        $region54: #{tpu_custom_call.1} parent=47 // pred_check_branch
          %327 = sbr.rel (%p325) target = $region56
        $region55: #{tpu_custom_call.1} parent=47 // pred_region
          %328 = dma.done %s321, 256
        $region56: #{tpu_custom_call.1} parent=47 // pred_fallthru
          _
        // Predicated region
        $region57: #{tpu_custom_call.1} parent=47 // pred_check
          %p329 = pneg %p98
        $region58: #{tpu_custom_call.1} parent=47 // pred_check_branch
          %331 = sbr.rel (%p329) target = $region60
        $region59: #{tpu_custom_call.1} parent=47 // pred_region
          %332 = dma.done [#allocation7], 512
        $region60: #{tpu_custom_call.1} parent=47 // pred_fallthru
          _
        // Predicated region
        $region61: #{tpu_custom_call.1} parent=47 // pred_check
          %p333 = pneg %p140
        $region62: #{tpu_custom_call.1} parent=47 // pred_check_branch
          %335 = sbr.rel (%p333) target = $region64
        $region63: #{tpu_custom_call.1} parent=47 // pred_region
          %336 = dma.done [#allocation10], 512
        $region64: #{tpu_custom_call.1} parent=47 // pred_fallthru
          _
        %s337 = sand.u32 %s38, 1
        %s338 = scalar_lea.sflag [#allocation4], %s337
        %s339 = sand.u32 %s38, 1
        %s340 = smul.addr %s339, 16
        %s341 = scalar_lea.vmem [#allocation3], %s340
        %p342 = pneg %p51
        %p343 = pneg %p48
        %s344 = sand.u32 %s30, 1
        %s345 = scalar_lea.sflag [#allocation7], %s344
        %s346 = sand.u32 %s64, 1
        %s347 = smul.addr %s346, 16
        %s348 = scalar_lea.vmem [#allocation6], %s347
        %p349 = pneg %p77
        %p350 = pneg %p74
        %p351 = pneg %p98
        %p352 = pneg %p95
        %p353 = pneg %p119
        %p354 = pneg %p116
        %p355 = pneg %p140
        %p356 = pneg %p137
        %p357 = pneg %p161
        %p358 = pneg %p158
        %p359 = pneg %p182
        %p360 = pneg %p179
        %p361 = pneg %p208
        %p362 = pneg %p205
        %s363 = sand.u32 %s195, 1
        %s364 = scalar_lea.sflag [#allocation5], %s363
        %s365 = sand.u32 %s195, 1
        %s366 = smul.addr %s365, 16
        %s367 = scalar_lea.vmem [#allocation11], %s366
        %s368 = smul.u32 2, %s30
        %s369 = smul.u32 2, %s30
        %v370 = vld [vmem:[%s315] sm:$0xff]
        %v371 = vld [vmem:[%s315 + $0x8] sm:$0xff]
        %v372 = vld [vmem:[#allocation8] sm:$0xff]
        %v373 = vld [vmem:[#allocation8 + $0x8] sm:$0xff]
        %v374 = vld [vmem:[#allocation8 + $0x10] sm:$0xff]
        %v375 = vld [vmem:[#allocation8 + $0x18] sm:$0xff]
        %v376 = vld [vmem:[%s3] sm:$0x1]
        %v378 = vlaneseq
        %v379 = vshrl.u32 %v378, 7
        %v380 = vsub.s32 0, %v379
        %v381 = vrot.slane %v376, %v380
        %vm383 = vcmask 261120
        %v385 = vsel %vm383, %v370, 0
        %v388 = vsel %vm383, %v371, 0
        %390 = vmatprep.subr.mxu0 0.0
        %391 = vmatpush1.msra.mxu0 0.0
        %392 = vmatprep.subr.mxu0 0.0
        %393 = vmatpush1.msra.mxu0 0.0
        %394 = vmatprep.subr.mxu0 0.0
        %395 = vmatpush1.msra.mxu0 0.0
        %396 = vmatprep.subr.mxu0 0.0
        %397 = vmatpush1.msra.mxu0 0.0
        %398 = vmatprep.subr.mxu0 0.0
        %399 = vmatpush1.msra.mxu0 0.0
        %400 = vmatprep.subr.mxu0 0.0
        %401 = vmatpush1.msra.mxu0 0.0
        %402 = vmatprep.subr.mxu0 0.0
        %403 = vmatpush1.msra.mxu0 0.0
        %404 = vmatprep.subr.mxu0 0.0
        %405 = vmatpush1.msra.mxu0 0.0
        %406 = vmatprep.subr.mxu0 0.0
        %407 = vmatpush1.msra.mxu0 0.0
        %408 = vmatprep.subr.mxu0 0.0
        %409 = vmatpush1.msra.mxu0 0.0
        %410 = vmatprep.subr.mxu0 0.0
        %411 = vmatpush1.msra.mxu0 0.0
        %412 = vmatprep.subr.mxu0 0.0
        %413 = vmatpush1.msra.mxu0 0.0
        %414 = vmatprep.subr.mxu0 0.0
        %415 = vmatpush1.msra.mxu0 %v375
        %416 = vmatprep.subr.mxu0 0.0
        %417 = vmatpush1.msra.mxu0 %v374
        %418 = vmatprep.subr.mxu0 0.0
        %419 = vmatpush1.msra.mxu0 %v373
        %420 = vmatprep.subr.mxu0 0.0
        %421 = vmatpush1.msra.mxu0 %v372
        %422 = vmatprep.subr.mxu0 0.0
        %423 = vmatpush2.msra.mxu0 0.0
        %424 = vmatprep.subr.mxu0 0.0
        %425 = vmatpush2.msra.mxu0 0.0
        %426 = vmatprep.subr.mxu0 0.0
        %427 = vmatpush2.msra.mxu0 0.0
        %428 = vmatprep.subr.mxu0 0.0
        %429 = vmatpush2.msra.mxu0 0.0
        %430 = vmatprep.subr.mxu0 0.0
        %431 = vmatpush2.msra.mxu0 0.0
        %432 = vmatprep.subr.mxu0 0.0
        %433 = vmatpush2.msra.mxu0 0.0
        %434 = vmatprep.subr.mxu0 0.0
        %435 = vmatpush2.msra.mxu0 0.0
        %436 = vmatprep.subr.mxu0 0.0
        %437 = vmatpush2.msra.mxu0 0.0
        %438 = vmatprep.subr.mxu0 0.0
        %439 = vmatpush2.msra.mxu0 0.0
        %440 = vmatprep.subr.mxu0 0.0
        %441 = vmatpush2.msra.mxu0 0.0
        %442 = vmatprep.subr.mxu0 0.0
        %443 = vmatpush2.msra.mxu0 0.0
        %444 = vmatprep.subr.mxu0 0.0
        %445 = vmatpush2.msra.mxu0 0.0
        %446 = vmatprep.subr.mxu0 0.0
        %447 = vmatpush2.msra.mxu0 0.0
        %448 = vmatprep.subr.mxu0 0.0
        %449 = vmatpush2.msra.mxu0 0.0
        %450 = vmatprep.subr.mxu0 0.0
        %451 = vmatpush2.msra.mxu0 0.0
        %452 = vmatprep.subr.mxu0 0.0
        %453 = vmatpush2.msra.mxu0 0.0
        %454 = vmatprep.mubr.f32.mxu0 0.0
        %455 = vmatmul.mubr.f32.gmra.mxu0 %v385
        %v456 = vpop.f32.mrf.mxu0
        %v457 = vadd.f32 %v381, %v456
        %v458 = vpop.f32.mrf.mxu0
        %459 = vmatprep.mubr.f32.mxu0 0.0
        %460 = vmatmul.mubr.f32.gmra.mxu0 %v388
        %v461 = vpop.f32.mrf.mxu0
        %v462 = vadd.f32 %v381, %v461
        %v463 = vpop.f32.mrf.mxu0
        %464 = vdwg.mxu0
        %v465 = vld [vmem:[#allocation9] sm:$0xff]
        %v466 = vld [vmem:[#allocation9 + $0x8] sm:$0xff]
        %v467 = vld [vmem:[#allocation9 + $0x10] sm:$0xff]
        %v468 = vld [vmem:[#allocation9 + $0x18] sm:$0xff]
        %v470 = vsel %vm383, %v457, 0
        %v473 = vsel %vm383, %v462, 0
        %475 = vmatprep.subr.mxu0 0.0
        %476 = vmatpush1.msra.mxu0 0.0
        %477 = vmatprep.subr.mxu0 0.0
        %478 = vmatpush1.msra.mxu0 0.0
        %479 = vmatprep.subr.mxu0 0.0
        %480 = vmatpush1.msra.mxu0 0.0
        %481 = vmatprep.subr.mxu0 0.0
        %482 = vmatpush1.msra.mxu0 0.0
        %483 = vmatprep.subr.mxu0 0.0
        %484 = vmatpush1.msra.mxu0 0.0
        %485 = vmatprep.subr.mxu0 0.0
        %486 = vmatpush1.msra.mxu0 0.0
        %487 = vmatprep.subr.mxu0 0.0
        %488 = vmatpush1.msra.mxu0 0.0
        %489 = vmatprep.subr.mxu0 0.0
        %490 = vmatpush1.msra.mxu0 0.0
        %491 = vmatprep.subr.mxu0 0.0
        %492 = vmatpush1.msra.mxu0 0.0
        %493 = vmatprep.subr.mxu0 0.0
        %494 = vmatpush1.msra.mxu0 0.0
        %495 = vmatprep.subr.mxu0 0.0
        %496 = vmatpush1.msra.mxu0 0.0
        %497 = vmatprep.subr.mxu0 0.0
        %498 = vmatpush1.msra.mxu0 0.0
        %499 = vmatprep.subr.mxu0 0.0
        %500 = vmatpush1.msra.mxu0 %v468
        %501 = vmatprep.subr.mxu0 0.0
        %502 = vmatpush1.msra.mxu0 %v467
        %503 = vmatprep.subr.mxu0 0.0
        %504 = vmatpush1.msra.mxu0 %v466
        %505 = vmatprep.subr.mxu0 0.0
        %506 = vmatpush1.msra.mxu0 %v465
        %507 = vmatprep.subr.mxu0 0.0
        %508 = vmatpush2.msra.mxu0 0.0
        %509 = vmatprep.subr.mxu0 0.0
        %510 = vmatpush2.msra.mxu0 0.0
        %511 = vmatprep.subr.mxu0 0.0
        %512 = vmatpush2.msra.mxu0 0.0
        %513 = vmatprep.subr.mxu0 0.0
        %514 = vmatpush2.msra.mxu0 0.0
        %515 = vmatprep.subr.mxu0 0.0
        %516 = vmatpush2.msra.mxu0 0.0
        %517 = vmatprep.subr.mxu0 0.0
        %518 = vmatpush2.msra.mxu0 0.0
        %519 = vmatprep.subr.mxu0 0.0
        %520 = vmatpush2.msra.mxu0 0.0
        %521 = vmatprep.subr.mxu0 0.0
        %522 = vmatpush2.msra.mxu0 0.0
        %523 = vmatprep.subr.mxu0 0.0
        %524 = vmatpush2.msra.mxu0 0.0
        %525 = vmatprep.subr.mxu0 0.0
        %526 = vmatpush2.msra.mxu0 0.0
        %527 = vmatprep.subr.mxu0 0.0
        %528 = vmatpush2.msra.mxu0 0.0
        %529 = vmatprep.subr.mxu0 0.0
        %530 = vmatpush2.msra.mxu0 0.0
        %531 = vmatprep.subr.mxu0 0.0
        %532 = vmatpush2.msra.mxu0 0.0
        %533 = vmatprep.subr.mxu0 0.0
        %534 = vmatpush2.msra.mxu0 0.0
        %535 = vmatprep.subr.mxu0 0.0
        %536 = vmatpush2.msra.mxu0 0.0
        %537 = vmatprep.subr.mxu0 0.0
        %538 = vmatpush2.msra.mxu0 0.0
        %539 = vmatprep.mubr.f32.mxu0 0.0
        %540 = vmatmul.mubr.f32.gmra.mxu0 %v470
        %v541 = vpop.f32.mrf.mxu0
        %v542 = vadd.f32 0.0, %v541
        %v543 = vpop.f32.mrf.mxu0
        %544 = vmatprep.mubr.f32.mxu0 0.0
        %545 = vmatmul.mubr.f32.gmra.mxu0 %v473
        %v546 = vpop.f32.mrf.mxu0
        %v547 = vadd.f32 0.0, %v546
        %v548 = vpop.f32.mrf.mxu0
        %549 = vdwg.mxu0
        %v550 = vld [vmem:[%s5] sm:$0x3]
        %v551 = vld [vmem:[#allocation2] sm:$0x1]
        %v552 = vld [vmem:[%s324] sm:$0xff]
        %v553 = vld [vmem:[%s324 + $0x8] sm:$0xff]
        %v555 = vsel %vm383, %v542, 0
        %v558 = vsel %vm383, %v547, 0
        %560 = vmatprep.subr.mxu0 0.0
        %561 = vmatpush1.xpose.msra.mxu0 0.0
        %562 = vmatprep.subr.mxu0 0.0
        %563 = vmatpush1.xpose.msra.mxu0 0.0
        %564 = vmatprep.subr.mxu0 0.0
        %565 = vmatpush1.xpose.msra.mxu0 0.0
        %566 = vmatprep.subr.mxu0 0.0
        %567 = vmatpush1.xpose.msra.mxu0 0.0
        %568 = vmatprep.subr.mxu0 0.0
        %569 = vmatpush1.xpose.msra.mxu0 0.0
        %570 = vmatprep.subr.mxu0 0.0
        %571 = vmatpush1.xpose.msra.mxu0 0.0
        %572 = vmatprep.subr.mxu0 0.0
        %573 = vmatpush1.xpose.msra.mxu0 0.0
        %574 = vmatprep.subr.mxu0 0.0
        %575 = vmatpush1.xpose.msra.mxu0 0.0
        %576 = vmatprep.subr.mxu0 0.0
        %577 = vmatpush1.xpose.msra.mxu0 0.0
        %578 = vmatprep.subr.mxu0 0.0
        %579 = vmatpush1.xpose.msra.mxu0 0.0
        %580 = vmatprep.subr.mxu0 0.0
        %581 = vmatpush1.xpose.msra.mxu0 0.0
        %582 = vmatprep.subr.mxu0 0.0
        %583 = vmatpush1.xpose.msra.mxu0 0.0
        %584 = vmatprep.subr.mxu0 0.0
        %585 = vmatpush1.xpose.msra.mxu0 0.0
        %586 = vmatprep.subr.mxu0 0.0
        %587 = vmatpush1.xpose.msra.mxu0 0.0
        %588 = vmatprep.subr.mxu0 0.0
        %589 = vmatpush1.xpose.msra.mxu0 %v558
        %590 = vmatprep.subr.mxu0 0.0
        %591 = vmatpush1.xpose.msra.mxu0 %v555
        %592 = vmatprep.subr.mxu0 0.0
        %593 = vmatpush2.xpose.msra.mxu0 0.0
        %594 = vmatprep.subr.mxu0 0.0
        %595 = vmatpush2.xpose.msra.mxu0 0.0
        %596 = vmatprep.subr.mxu0 0.0
        %597 = vmatpush2.xpose.msra.mxu0 0.0
        %598 = vmatprep.subr.mxu0 0.0
        %599 = vmatpush2.xpose.msra.mxu0 0.0
        %600 = vmatprep.subr.mxu0 0.0
        %601 = vmatpush2.xpose.msra.mxu0 0.0
        %602 = vmatprep.subr.mxu0 0.0
        %603 = vmatpush2.xpose.msra.mxu0 0.0
        %604 = vmatprep.subr.mxu0 0.0
        %605 = vmatpush2.xpose.msra.mxu0 0.0
        %606 = vmatprep.subr.mxu0 0.0
        %607 = vmatpush2.xpose.msra.mxu0 0.0
        %608 = vmatprep.subr.mxu0 0.0
        %609 = vmatpush2.xpose.msra.mxu0 0.0
        %610 = vmatprep.subr.mxu0 0.0
        %611 = vmatpush2.xpose.msra.mxu0 0.0
        %612 = vmatprep.subr.mxu0 0.0
        %613 = vmatpush2.xpose.msra.mxu0 0.0
        %614 = vmatprep.subr.mxu0 0.0
        %615 = vmatpush2.xpose.msra.mxu0 0.0
        %616 = vmatprep.subr.mxu0 0.0
        %617 = vmatpush2.xpose.msra.mxu0 0.0
        %618 = vmatprep.subr.mxu0 0.0
        %619 = vmatpush2.xpose.msra.mxu0 0.0
        %620 = vmatprep.subr.mxu0 0.0
        %621 = vmatpush2.xpose.msra.mxu0 0.0
        %622 = vmatprep.subr.mxu0 0.0
        %623 = vmatpush2.xpose.msra.mxu0 0.0
        %624 = vmatprep.mubr.f32.mxu0 0.0
        %625 = vmatmul.mubr.f32.gmra.mxu0 %v470
        %v626 = vpop.f32.mrf.mxu0
        %v627 = vadd.f32 0.0, %v626
        %v628 = vpop.f32.mrf.mxu0
        %629 = vmatprep.mubr.f32.mxu0 0.0
        %630 = vmatmul.mubr.f32.gmra.mxu0 %v473
        %v631 = vpop.f32.mrf.mxu0
        %v632 = vadd.f32 0.0, %v631
        %v633 = vpop.f32.mrf.mxu0
        %634 = vdwg.mxu0
        %635 = vmatprep.subr.mxu0 0.0
        %636 = vmatpush1.xpose.msra.mxu0 0.0
        %637 = vmatprep.subr.mxu0 0.0
        %638 = vmatpush1.xpose.msra.mxu0 0.0
        %639 = vmatprep.subr.mxu0 0.0
        %640 = vmatpush1.xpose.msra.mxu0 0.0
        %641 = vmatprep.subr.mxu0 0.0
        %642 = vmatpush1.xpose.msra.mxu0 0.0
        %643 = vmatprep.subr.mxu0 0.0
        %644 = vmatpush1.xpose.msra.mxu0 0.0
        %645 = vmatprep.subr.mxu0 0.0
        %646 = vmatpush1.xpose.msra.mxu0 0.0
        %647 = vmatprep.subr.mxu0 0.0
        %648 = vmatpush1.xpose.msra.mxu0 0.0
        %649 = vmatprep.subr.mxu0 0.0
        %650 = vmatpush1.xpose.msra.mxu0 0.0
        %651 = vmatprep.subr.mxu0 0.0
        %652 = vmatpush1.xpose.msra.mxu0 0.0
        %653 = vmatprep.subr.mxu0 0.0
        %654 = vmatpush1.xpose.msra.mxu0 0.0
        %655 = vmatprep.subr.mxu0 0.0
        %656 = vmatpush1.xpose.msra.mxu0 0.0
        %657 = vmatprep.subr.mxu0 0.0
        %658 = vmatpush1.xpose.msra.mxu0 0.0
        %659 = vmatprep.subr.mxu0 0.0
        %660 = vmatpush1.xpose.msra.mxu0 0.0
        %661 = vmatprep.subr.mxu0 0.0
        %662 = vmatpush1.xpose.msra.mxu0 0.0
        %663 = vmatprep.subr.mxu0 0.0
        %664 = vmatpush1.xpose.msra.mxu0 %v473
        %665 = vmatprep.subr.mxu0 0.0
        %666 = vmatpush1.xpose.msra.mxu0 %v470
        %667 = vmatprep.subr.mxu0 0.0
        %668 = vmatpush2.xpose.msra.mxu0 0.0
        %669 = vmatprep.subr.mxu0 0.0
        %670 = vmatpush2.xpose.msra.mxu0 0.0
        %671 = vmatprep.subr.mxu0 0.0
        %672 = vmatpush2.xpose.msra.mxu0 0.0
        %673 = vmatprep.subr.mxu0 0.0
        %674 = vmatpush2.xpose.msra.mxu0 0.0
        %675 = vmatprep.subr.mxu0 0.0
        %676 = vmatpush2.xpose.msra.mxu0 0.0
        %677 = vmatprep.subr.mxu0 0.0
        %678 = vmatpush2.xpose.msra.mxu0 0.0
        %679 = vmatprep.subr.mxu0 0.0
        %680 = vmatpush2.xpose.msra.mxu0 0.0
        %681 = vmatprep.subr.mxu0 0.0
        %682 = vmatpush2.xpose.msra.mxu0 0.0
        %683 = vmatprep.subr.mxu0 0.0
        %684 = vmatpush2.xpose.msra.mxu0 0.0
        %685 = vmatprep.subr.mxu0 0.0
        %686 = vmatpush2.xpose.msra.mxu0 0.0
        %687 = vmatprep.subr.mxu0 0.0
        %688 = vmatpush2.xpose.msra.mxu0 0.0
        %689 = vmatprep.subr.mxu0 0.0
        %690 = vmatpush2.xpose.msra.mxu0 0.0
        %691 = vmatprep.subr.mxu0 0.0
        %692 = vmatpush2.xpose.msra.mxu0 0.0
        %693 = vmatprep.subr.mxu0 0.0
        %694 = vmatpush2.xpose.msra.mxu0 0.0
        %695 = vmatprep.subr.mxu0 0.0
        %696 = vmatpush2.xpose.msra.mxu0 0.0
        %697 = vmatprep.subr.mxu0 0.0
        %698 = vmatpush2.xpose.msra.mxu0 0.0
        %699 = vmatprep.mubr.f32.mxu0 0.0
        %700 = vmatmul.mubr.f32.gmra.mxu0 %v555
        %v701 = vpop.f32.mrf.mxu0
        %v702 = vadd.f32 %v627, %v701
        %v703 = vpop.f32.mrf.mxu0
        %704 = vmatprep.mubr.f32.mxu0 0.0
        %705 = vmatmul.mubr.f32.gmra.mxu0 %v558
        %v706 = vpop.f32.mrf.mxu0
        %v707 = vadd.f32 %v632, %v706
        %v708 = vpop.f32.mrf.mxu0
        %709 = vdwg.mxu0
        %vm710 = vcmp.gt.f32.partialorder %v552, 0.0
        %vm711 = vcmp.gt.f32.partialorder %v553, 0.0
        %v712 = vsel %vm710, %v702, -9e+15
        %v713 = vsel %vm711, %v707, -9e+15
        %vm714 = vcmask 130048
        %v715 = vsel %vm714, %v712, -inf
        %v716 = vsel %vm714, %v713, -inf
        %v717 = vmax.f32 %v715, %v716
        %v718 = vrot.slane %v717, 4
        %v719 = vmax.f32 %v717, %v718
        %v720 = vrot.slane %v719, 2
        %v721 = vmax.f32 %v719, %v720
        %v722 = vrot.slane %v721, 1
        %v723 = vmax.f32 %v721, %v722
        %v724 = vsub.f32 %v712, %v723
        %v725 = vsub.f32 %v713, %v723
        %v726 = vmul.f32 %v724, 1.442695
        %v727 = vpow.pop %v726
        %v728 = vmul.f32 %v725, 1.442695
        %v729 = vpow.pop %v728
        %v730 = vsel %vm714, %v727, 0.0
        %v731 = vsel %vm714, %v729, 0.0
        %v732 = vadd.f32 %v730, %v731
        %v733 = vrot.slane %v732, 4
        %v734 = vadd.f32 %v732, %v733
        %v735 = vrot.slane %v734, 2
        %v736 = vadd.f32 %v734, %v735
        %v737 = vrot.slane %v736, 1
        %v738 = vadd.f32 %v736, %v737
        %v739 = vrcp.pop %v738
        %v740 = vmul.f32 %v727, %v739
        %v741 = vmul.f32 %v729, %v739
        %v742 = vmul.f32 %v740, %v552
        %v743 = vmul.f32 %v741, %v553
        %v745 = vsel %vm714, %v742, 0
        %v748 = vsel %vm714, %v743, 0
        %750 = vmatprep.subr.mxu0 0.0
        %751 = vmatpush1.msra.mxu0 0.0
        %752 = vmatprep.subr.mxu0 0.0
        %753 = vmatpush1.msra.mxu0 0.0
        %754 = vmatprep.subr.mxu0 0.0
        %755 = vmatpush1.msra.mxu0 0.0
        %756 = vmatprep.subr.mxu0 0.0
        %757 = vmatpush1.msra.mxu0 0.0
        %758 = vmatprep.subr.mxu0 0.0
        %759 = vmatpush1.msra.mxu0 0.0
        %760 = vmatprep.subr.mxu0 0.0
        %761 = vmatpush1.msra.mxu0 0.0
        %762 = vmatprep.subr.mxu0 0.0
        %763 = vmatpush1.msra.mxu0 0.0
        %764 = vmatprep.subr.mxu0 0.0
        %765 = vmatpush1.msra.mxu0 0.0
        %766 = vmatprep.subr.mxu0 0.0
        %767 = vmatpush1.msra.mxu0 0.0
        %768 = vmatprep.subr.mxu0 0.0
        %769 = vmatpush1.msra.mxu0 0.0
        %770 = vmatprep.subr.mxu0 0.0
        %771 = vmatpush1.msra.mxu0 0.0
        %772 = vmatprep.subr.mxu0 0.0
        %773 = vmatpush1.msra.mxu0 0.0
        %774 = vmatprep.subr.mxu0 0.0
        %775 = vmatpush1.msra.mxu0 0.0
        %776 = vmatprep.subr.mxu0 0.0
        %777 = vmatpush1.msra.mxu0 0.0
        %778 = vmatprep.subr.mxu0 0.0
        %779 = vmatpush1.msra.mxu0 %v462
        %780 = vmatprep.subr.mxu0 0.0
        %781 = vmatpush1.msra.mxu0 %v457
        %782 = vmatprep.subr.mxu0 0.0
        %783 = vmatpush2.msra.mxu0 0.0
        %784 = vmatprep.subr.mxu0 0.0
        %785 = vmatpush2.msra.mxu0 0.0
        %786 = vmatprep.subr.mxu0 0.0
        %787 = vmatpush2.msra.mxu0 0.0
        %788 = vmatprep.subr.mxu0 0.0
        %789 = vmatpush2.msra.mxu0 0.0
        %790 = vmatprep.subr.mxu0 0.0
        %791 = vmatpush2.msra.mxu0 0.0
        %792 = vmatprep.subr.mxu0 0.0
        %793 = vmatpush2.msra.mxu0 0.0
        %794 = vmatprep.subr.mxu0 0.0
        %795 = vmatpush2.msra.mxu0 0.0
        %796 = vmatprep.subr.mxu0 0.0
        %797 = vmatpush2.msra.mxu0 0.0
        %798 = vmatprep.subr.mxu0 0.0
        %799 = vmatpush2.msra.mxu0 0.0
        %800 = vmatprep.subr.mxu0 0.0
        %801 = vmatpush2.msra.mxu0 0.0
        %802 = vmatprep.subr.mxu0 0.0
        %803 = vmatpush2.msra.mxu0 0.0
        %804 = vmatprep.subr.mxu0 0.0
        %805 = vmatpush2.msra.mxu0 0.0
        %806 = vmatprep.subr.mxu0 0.0
        %807 = vmatpush2.msra.mxu0 0.0
        %808 = vmatprep.subr.mxu0 0.0
        %809 = vmatpush2.msra.mxu0 0.0
        %810 = vmatprep.subr.mxu0 0.0
        %811 = vmatpush2.msra.mxu0 0.0
        %812 = vmatprep.subr.mxu0 0.0
        %813 = vmatpush2.msra.mxu0 0.0
        %814 = vmatprep.mubr.f32.mxu0 0.0
        %815 = vmatmul.mubr.f32.gmra.mxu0 %v745
        %v816 = vpop.f32.mrf.mxu0
        %v817 = vadd.f32 0.0, %v816
        %v818 = vpop.f32.mrf.mxu0
        %819 = vmatprep.mubr.f32.mxu0 0.0
        %820 = vmatmul.mubr.f32.gmra.mxu0 %v748
        %v821 = vpop.f32.mrf.mxu0
        %v822 = vadd.f32 0.0, %v821
        %v823 = vpop.f32.mrf.mxu0
        %824 = vdwg.mxu0
        %v825 = vmax.f32 %v817, 0.0
        %v826 = vmax.f32 %v822, 0.0
        %v827 = vlaneseq
        %v828 = vshrl.u32 %v827, 7
        %v829 = vsub.s32 0, %v828
        %v830 = vrot.slane %v550, %v829
        %v831 = vmul.f32 %v370, %v830
        %v832 = vmul.f32 %v371, %v830
        %v833 = vsel %vm383, %v831, 0.0
        %834 = vadd.xlane.f32.xlu0 %v833
        %v835 = vpop.xlane.xlu0 %834
        %v836 = vsel %vm383, %v832, 0.0
        %837 = vadd.xlane.f32.xlu0 %v836
        %v838 = vpop.xlane.xlu0 %837
        %v839 = vlaneseq
        %v840 = vshrl.u32 %v839, 7
        %v841 = vsub.s32 1, %v840
        %v842 = vrot.slane %v550, %v841
        %v843 = vmul.f32 %v825, %v842
        %v844 = vmul.f32 %v826, %v842
        %v845 = vsel %vm383, %v843, 0.0
        %846 = vadd.xlane.f32.xlu0 %v845
        %v847 = vpop.xlane.xlu0 %846
        %v848 = vsel %vm383, %v844, 0.0
        %849 = vadd.xlane.f32.xlu0 %v848
        %v850 = vpop.xlane.xlu0 %849
        %v851 = vadd.f32 %v835, %v847
        %v852 = vadd.f32 %v838, %v850
        %v854 = vlaneseq
        %v855 = vshrl.u32 %v854, 7
        %v856 = vsub.s32 0, %v855
        %v857 = vrot.slane %v551, %v856
        %v859 = vadd.f32 %v851, %v857
        %v860 = vadd.f32 %v852, %v857
        %v861 = vxor.u32 %v859, 2147483648
        %v862 = vxor.u32 %v860, 2147483648
        %v863 = vmul.f32 %v861, 1.442695
        %v864 = vpow.pop %v863
        %v865 = vmul.f32 %v862, 1.442695
        %v866 = vpow.pop %v865
        %v867 = vadd.f32 %v864, 1.0
        %v868 = vadd.f32 %v866, 1.0
        %v869 = vrcp.pop %v867
        %v870 = vmul.f32 1.0, %v869
        %v871 = vrcp.pop %v868
        %v872 = vmul.f32 1.0, %v871
        %874 = vset.pattern.permute.xlu0 0
        %875 = vperm.xlu0 %874, %v870
        %v876 = vpop.permute.xlu0 %875
        %879 = vset.pattern.permute.xlu0 0
        %880 = vperm.xlu0 %879, %v872
        %v881 = vpop.permute.xlu0 %880
        %v883 = vmul.f32 %v876, %v370
        %v884 = vmul.f32 %v881, %v371
        %v885 = vsub.f32 1.0, %v870
        %v886 = vsub.f32 1.0, %v872
        %888 = vset.pattern.permute.xlu0 0
        %889 = vperm.xlu0 %888, %v885
        %v890 = vpop.permute.xlu0 %889
        %893 = vset.pattern.permute.xlu0 0
        %894 = vperm.xlu0 %893, %v886
        %v895 = vpop.permute.xlu0 %894
        %v897 = vmul.f32 %v890, %v825
        %v898 = vmul.f32 %v895, %v826
        %v899 = vadd.f32 %v883, %v897
        %v900 = vadd.f32 %v884, %v898
        %901 = vst.msk [vmem:[%s367] sm:$0xff] %vm383, %v899
        %902 = vst.msk [vmem:[%s367 + $0x8] sm:$0xff] %vm383, %v900
        %s903 = sand.u32 %s195, 1
        %s904 = scalar_lea.sflag [#allocation5], %s903
        %s905 = sand.u32 %s195, 1
        %s906 = smul.addr %s905, 16
        %s907 = scalar_lea.vmem [#allocation11], %s906
        // Predicated region
        $region65: #{tpu_custom_call.1} parent=47 // pred_check
          %p908 = pneg %p205
        $region66: #{tpu_custom_call.1} parent=47 // pred_check_branch
          %910 = sbr.rel (%p908) target = $region68
        $region67: #{tpu_custom_call.1} parent=47 // pred_region
          %s911 = smul.u32 2, %s30
          %s913 = ssub.s32 256, 256
          %914 = vsyncadd %s904, %s913
          %s915 = smul.addr %s911, 128
          %s916 = scalar_lea.hbm %s7, %s915
          %s917 = sshll.u32 %s907, 4
          %s918 = int_to_ptr.vmem [resolvable:$true] %s917
          %923 = dma.vmem_to_hbm [thread:$0]  %s918, 256, %s916, %s904, 128, 128, 8
        $region68: #{tpu_custom_call.1} parent=47 // pred_fallthru
          _
      $region48: #{tpu_custom_call.1} parent=5 // pred_fallthru
        _
      %p924 = scmp.le.s32.totalorder 2, %s25
      // Predicated region
      $region69: #{tpu_custom_call.1} parent=5 // pred_check
        %p925 = pneg %p924
      $region70: #{tpu_custom_call.1} parent=5 // pred_check_branch
        %927 = sbr.rel (%p925) target = $region72
      $region71: #{tpu_custom_call.1} parent=5 // pred_region
        %s928 = ssub.s32 %s25, 2
        // Predicated region
        $region73: #{tpu_custom_call.1} parent=71 // pred_check
          %p929 = pneg %p211
        $region74: #{tpu_custom_call.1} parent=71 // pred_check_branch
          %931 = sbr.rel (%p929) target = $region76
        $region75: #{tpu_custom_call.1} parent=71 // pred_region
          %s932 = sand.u32 %s196, 1
          %s933 = scalar_lea.sflag [#allocation5], %s932
          %s934 = sand.u32 %s196, 1
          %s935 = smul.addr %s934, 16
          %s936 = scalar_lea.vmem [#allocation11], %s935
          %937 = dma.done %s933, 256
        $region76: #{tpu_custom_call.1} parent=71 // pred_fallthru
          _
      $region72: #{tpu_custom_call.1} parent=5 // pred_fallthru
        _
    $region6: #{tpu_custom_call.1} parent=1 // loop_footer
      %s29 = sadd.s32 1, %s25
    $region7: #{tpu_custom_call.1} parent=1 // loop_footer_branch
      %24 = sbr.rel target = $region3
    $region8: #{tpu_custom_call.1} parent=1 // loop_exit
      _
    %938 = vsyncpa [#allocation4], 1
    %s939 = scalar_lea.sflag [#allocation4], 1
    %940 = vsyncpa %s939, 1
    %941 = vsyncpa [#allocation7], 1
    %s942 = scalar_lea.sflag [#allocation7], 1
    %943 = vsyncpa %s942, 1
    %944 = vsyncpa [#allocation10], 1
    %945 = vsyncpa [#allocation5], 1
    %s946 = scalar_lea.sflag [#allocation5], 1
    %947 = vsyncpa %s946, 1

</llo_original>
